<compile_context>
chip_gen: v7x
topology: tpu7x:2x2x1
jax: 0.10.0
libtpu: 0.0.40
codegen_flags: <defaults>
</compile_context>

<pallas_src>
import functools
import math

import jax
import jax.numpy as jnp
from jax import lax
from jax.experimental import pallas as pl
from jax.experimental.pallas import tpu as pltpu


def _round_up(v, m):
    return ((v + m - 1) // m) * m


def _pick_tile(size, target, align):
    """Return (tile, padded_size): tile % align == 0, tile divides padded_size,
    padded_size - size < tile (pad to hardware minimum, not to tile multiples)."""
    padded = _round_up(size, align)
    if padded <= target:
        return padded, padded
    n_tiles = -(-padded // target)
    tile = _round_up(-(-padded // n_tiles), align)
    return tile, tile * n_tiles


def _pad2(arr, pad_r, pad_c):
    if pad_r or pad_c:
        arr = jnp.pad(arr, ((0, pad_r), (0, pad_c)))
    return arr


def _vmem_limit(nbytes):
    # Footprint + 30% headroom; never below the 32 MiB default, capped below
    # v7x's 64 MiB physical VMEM so one config serves v5e/v6e/v7x.
    return int(min(max(int(nbytes * 1.3), 32 * 1024 * 1024), 56 * 1024 * 1024))


def _gw_kernel(b_ref, w_ref, bias_ref, g_ref, d_ref, g_acc, d_acc):
    """Stage 1 (k-split over x):
         G tile (tn, x_p) = sum_k B(tn, tk) @ W(tk, x_p)
         d tile (1, tn)   = sum_k bias(1, tk) . B(tn, tk)^T
    """
    k = pl.program_id(1)

    @pl.when(k == 0)
    def _():
        g_acc[...] = jnp.zeros_like(g_acc)
        d_acc[...] = jnp.zeros_like(d_acc)

    b = b_ref[...]
    g_acc[...] += lax.dot_general(
        b, w_ref[...],
        dimension_numbers=(((1,), (0,)), ((), ())),
        preferred_element_type=jnp.float32)
    d_acc[...] += lax.dot_general(
        bias_ref[...], b,
        dimension_numbers=(((1,), (1,)), ((), ())),
        preferred_element_type=jnp.float32)

    @pl.when(k == pl.num_programs(1) - 1)
    def _():
        g_ref[...] = g_acc[...].astype(g_ref.dtype)
        d_ref[...] = d_acc[...].astype(d_ref.dtype)


def _out_kernel(a_ref, g_ref, d_ref, o_ref):
    """Stage 2: out tile (tm, tn) = A(tm, x_p) . G(tn, x_p)^T + d(1, tn)."""
    acc = lax.dot_general(
        a_ref[...], g_ref[...],
        dimension_numbers=(((1,), (1,)), ((), ())),
        preferred_element_type=jnp.float32)
    o_ref[...] = (acc + d_ref[...]).astype(o_ref.dtype)


@functools.partial(jax.jit, static_argnames=("tm", "tn", "tk"))
def my_bilinear(A, W, bias, B, *, tm=512, tn=256, tk=512):
    """A: (M, x), W: (x, x), bias: (x,), B: (N, x) -> (M, N) float32."""
    M, x = A.shape
    N, xb = B.shape
    assert xb == x and W.shape == (x, x) and bias.shape == (x,)

    bf16 = jnp.bfloat16
    f32 = jnp.float32

    # Hardware-minimum padding only (16 sublanes for bf16, 128 lanes); tiles
    # divide the padded extents, so there is no tile-multiple padding waste.
    tm, M_p = _pick_tile(M, tm, 16)
    tn, N_p = _pick_tile(N, tn, 128)
    tk, x_p = _pick_tile(x, tk, 128)

    m_tiles = M_p // tm
    n_tiles = N_p // tn
    k_tiles = x_p // tk

    # bf16 MXU operands (f32 accumulation in-kernel). Zero padding is exact.
    A_p = _pad2(A.astype(bf16), M_p - M, x_p - x)
    B_p = _pad2(B.astype(bf16), N_p - N, x_p - x)
    W_p = _pad2(W.astype(bf16), x_p - x, x_p - x)
    bias_p = _pad2(bias.astype(bf16).reshape(1, x), 0, x_p - x)

    # ---- Stage 1: G = B @ W  (N_p, x_p) bf16,  d = bias @ B.T  (1, N_p) f32 ----
    vmem1 = _vmem_limit(
        2 * tn * tk * 2        # B tile, double-buffered (bf16)
        + 2 * tk * x_p * 2     # W row-panel, double-buffered
        + 2 * 16 * tk * 2      # bias chunk (sublane-padded)
        + 2 * tn * x_p * 2     # G output tile
        + 2 * 16 * tn * 4      # d output tile
        + tn * x_p * 4         # G accumulator scratch
        + 16 * tn * 4)         # d accumulator scratch
    G, d = pl.pallas_call(
        _gw_kernel,
        out_shape=(jax.ShapeDtypeStruct((N_p, x_p), bf16),
                   jax.ShapeDtypeStruct((1, N_p), f32)),
        grid=(n_tiles, k_tiles),
        in_specs=[
            pl.BlockSpec((tn, tk), lambda j, k: (j, k)),    # B tile
            pl.BlockSpec((tk, x_p), lambda j, k: (k, 0)),   # W row-panel
            pl.BlockSpec((1, tk), lambda j, k: (0, k)),     # bias chunk
        ],
        out_specs=(
            pl.BlockSpec((tn, x_p), lambda j, k: (j, 0)),   # G tile (accum)
            pl.BlockSpec((1, tn), lambda j, k: (0, j)),     # d tile (accum)
        ),
        scratch_shapes=[
            pltpu.VMEM((tn, x_p), f32),
            pltpu.VMEM((1, tn), f32),
        ],
        compiler_params=pltpu.CompilerParams(
            dimension_semantics=("parallel", "arbitrary"),
            vmem_limit_bytes=vmem1),
        cost_estimate=pl.CostEstimate(
            flops=2 * N_p * x_p * x_p + 2 * N_p * x_p,
            transcendentals=0,
            bytes_accessed=(2 * N_p * x_p                 # B read
                            + 2 * n_tiles * x_p * x_p     # W re-read per n-tile
                            + 2 * n_tiles * x_p           # bias re-read
                            + 2 * N_p * x_p               # G write
                            + 4 * N_p)),                  # d write
    )(B_p, W_p, bias_p)

    # ---- Stage 2: out = A @ G.T + d ----
    # Leading grid axis = the one with more tiles (keeps both v7x TensorCores
    # busy); the fast trailing axis streams the other operand.
    if m_tiles >= n_tiles:
        grid2 = (m_tiles, n_tiles)
        a_map = lambda i, j: (i, 0)
        g_map = lambda i, j: (j, 0)
        d_map = lambda i, j: (0, j)
        o_map = lambda i, j: (i, j)
        a_reads, g_reads = 1, m_tiles
    else:
        grid2 = (n_tiles, m_tiles)
        a_map = lambda j, i: (i, 0)
        g_map = lambda j, i: (j, 0)
        d_map = lambda j, i: (0, j)
        o_map = lambda j, i: (i, j)
        a_reads, g_reads = n_tiles, 1

    vmem2 = _vmem_limit(
        2 * tm * x_p * 2       # A tile, double-buffered (bf16)
        + 2 * tn * x_p * 2     # G tile, double-buffered (bf16)
        + 2 * 16 * tn * 4      # d tile
        + 2 * tm * tn * 4)     # output tile
    # TODO(synk): for very large x (x_p >~ 16K) stage 2 should also k-split the
    # contraction dim so the streamed A/G tiles stay within the VMEM budget.
    out_p = pl.pallas_call(
        _out_kernel,
        out_shape=jax.ShapeDtypeStruct((M_p, N_p), f32),
        grid=grid2,
        in_specs=[
            pl.BlockSpec((tm, x_p), a_map),   # A tile
            pl.BlockSpec((tn, x_p), g_map),   # G tile (streamed)
            pl.BlockSpec((1, tn), d_map),     # d tile
        ],
        out_specs=pl.BlockSpec((tm, tn), o_map),
        compiler_params=pltpu.CompilerParams(
            dimension_semantics=("parallel", "parallel"),
            vmem_limit_bytes=vmem2),
        cost_estimate=pl.CostEstimate(
            flops=2 * M_p * N_p * x_p + M_p * N_p,
            transcendentals=0,
            bytes_accessed=(2 * a_reads * M_p * x_p
                            + 2 * g_reads * N_p * x_p
                            + 4 * g_reads * N_p
                            + 4 * M_p * N_p)),
    )(A_p, G, d)

    if M_p == M and N_p == N:
        return out_p
    return out_p[:M, :N]


if __name__ == "__main__":
    key = jax.random.PRNGKey(0)
    k_a, k_b, k_w, k_bias = jax.random.split(key, 4)

    x = 32   # hidden size of the Linear layer
    M = 8    # rows of A
    N = 16   # rows of B

    A = jax.random.normal(k_a, (M, x), dtype=jnp.float32)
    B = jax.random.normal(k_b, (N, x), dtype=jnp.float32)

    # Deterministic parameter init mimicking torch.nn.Linear default
    # (uniform in [-1/sqrt(x), 1/sqrt(x)]).
    bound = 1.0 / math.sqrt(x)
    W = jax.random.uniform(k_w, (x, x), dtype=jnp.float32,
                           minval=-bound, maxval=bound)
    bias = jax.random.uniform(k_bias, (x,), dtype=jnp.float32,
                              minval=-bound, maxval=bound)

    out = my_bilinear(A, W, bias, B)
    out = jax.block_until_ready(out)

    # Pure-JAX f32 reference of the original (un-reassociated) semantics.
    ref = jnp.dot(jnp.dot(A, W.T, precision="highest") + bias, B.T,
                  precision="highest")
    assert out.shape == (M, N)
    err = float(jnp.max(jnp.abs(out - ref)))
    scale = float(jnp.max(jnp.abs(ref)))
    # bf16 MXU operands with f32 accumulation -> ~1% relative tolerance.
    assert err <= 5e-2 * scale + 1e-3, (err, scale)

    print("KERNEL_OK")
</pallas_src>

<mosaic_0001>
module attributes {stable_mosaic.version = 11 : i64} {
  func.func @_gw_kernel(%arg0: i32, %arg1: i32, %arg2: memref<128x128xbf16, #tpu.memory_space<vmem>>, %arg3: memref<128x128xbf16, #tpu.memory_space<vmem>>, %arg4: memref<1x128xbf16, #tpu.memory_space<vmem>>, %arg5: memref<128x128xbf16, #tpu.memory_space<vmem>>, %arg6: memref<1x128xf32, #tpu.memory_space<vmem>>, %arg7: memref<128x128xf32, #tpu.memory_space<vmem>>, %arg8: memref<1x128xf32, #tpu.memory_space<vmem>>) attributes {dimension_semantics = [#tpu.dimension_semantics<parallel>, #tpu.dimension_semantics<arbitrary>], iteration_bounds = array<i64: 1, 1>, scalar_prefetch = 0 : i64, scratch_operands = 2 : i64, tpu.core_type = #tpu.core_type<tc>, window_params = [{transform_indices = @transform_0, window_bounds = array<i64: 128, 128>}, {transform_indices = @transform_1, window_bounds = array<i64: 128, 128>}, {transform_indices = @transform_2, window_bounds = array<i64: 1, 128>}, {transform_indices = @transform_3, window_bounds = array<i64: 128, 128>}, {transform_indices = @transform_4, window_bounds = array<i64: 1, 128>}]} {
    %c0_i32 = arith.constant 0 : i32
    %0 = arith.cmpi eq, %arg1, %c0_i32 : i32
    %1 = arith.extui %0 : i1 to i32
    %c0_i32_0 = arith.constant 0 : i32
    %2 = arith.cmpi ne, %1, %c0_i32_0 : i32
    scf.if %2 {
      %cst_17 = arith.constant 0.000000e+00 : f32
      %17 = vector.broadcast %cst_17 : f32 to vector<128x128xf32>
      %c0_18 = arith.constant 0 : index
      %c0_19 = arith.constant 0 : index
      %18 = vector.load %arg7[%c0_18, %c0_19] : memref<128x128xf32, #tpu.memory_space<vmem>>, vector<128x128xf32>
      tpu.vector_store %arg7[%c0_18, %c0_19], %17 {strides = array<i32>} : memref<128x128xf32, #tpu.memory_space<vmem>>, vector<128x128xf32>,
      %cst_20 = arith.constant 0.000000e+00 : f32
      %19 = vector.broadcast %cst_20 : f32 to vector<1x128xf32>
      %c0_21 = arith.constant 0 : index
      %c0_22 = arith.constant 0 : index
      %20 = vector.load %arg8[%c0_21, %c0_22] : memref<1x128xf32, #tpu.memory_space<vmem>>, vector<1x128xf32>
      tpu.vector_store %arg8[%c0_21, %c0_22], %19 {strides = array<i32>} : memref<1x128xf32, #tpu.memory_space<vmem>>, vector<1x128xf32>,
    } else {
    }
    %c0 = arith.constant 0 : index
    %c0_1 = arith.constant 0 : index
    %3 = vector.load %arg2[%c0, %c0_1] : memref<128x128xbf16, #tpu.memory_space<vmem>>, vector<128x128xbf16>
    %c0_2 = arith.constant 0 : index
    %c0_3 = arith.constant 0 : index
    %4 = vector.load %arg7[%c0_2, %c0_3] : memref<128x128xf32, #tpu.memory_space<vmem>>, vector<128x128xf32>
    %c0_4 = arith.constant 0 : index
    %c0_5 = arith.constant 0 : index
    %5 = vector.load %arg3[%c0_4, %c0_5] : memref<128x128xbf16, #tpu.memory_space<vmem>>, vector<128x128xbf16>
    %cst = arith.constant dense<0.000000e+00> : vector<128x128xf32>
    %6 = tpu.matmul %3, %5, %cst {dimension_numbers = #tpu.dot_dimension_numbers<[1], [0], [0], [1], [0, 0, 1, 1], [], []>} : vector<128x128xbf16>, vector<128x128xbf16>, vector<128x128xf32> -> vector<128x128xf32>
    %7 = arith.addf %4, %6 : vector<128x128xf32>
    %c0_6 = arith.constant 0 : index
    %c0_7 = arith.constant 0 : index
    %8 = vector.load %arg7[%c0_6, %c0_7] : memref<128x128xf32, #tpu.memory_space<vmem>>, vector<128x128xf32>
    tpu.vector_store %arg7[%c0_6, %c0_7], %7 {strides = array<i32>} : memref<128x128xf32, #tpu.memory_space<vmem>>, vector<128x128xf32>,
    %c0_8 = arith.constant 0 : index
    %c0_9 = arith.constant 0 : index
    %9 = vector.load %arg8[%c0_8, %c0_9] : memref<1x128xf32, #tpu.memory_space<vmem>>, vector<1x128xf32>
    %c0_10 = arith.constant 0 : index
    %c0_11 = arith.constant 0 : index
    %10 = vector.load %arg4[%c0_10, %c0_11] : memref<1x128xbf16, #tpu.memory_space<vmem>>, vector<1x128xbf16>
    %cst_12 = arith.constant dense<0.000000e+00> : vector<1x128xf32>
    %11 = tpu.matmul %10, %3, %cst_12 {dimension_numbers = #tpu.dot_dimension_numbers<[1], [1], [0], [0], [0, 0, 1, 0], [], []>} : vector<1x128xbf16>, vector<128x128xbf16>, vector<1x128xf32> -> vector<1x128xf32>
    %12 = arith.addf %9, %11 : vector<1x128xf32>
    %c0_13 = arith.constant 0 : index
    %c0_14 = arith.constant 0 : index
    %13 = vector.load %arg8[%c0_13, %c0_14] : memref<1x128xf32, #tpu.memory_space<vmem>>, vector<1x128xf32>
    tpu.vector_store %arg8[%c0_13, %c0_14], %12 {strides = array<i32>} : memref<1x128xf32, #tpu.memory_space<vmem>>, vector<1x128xf32>,
    %c0_i32_15 = arith.constant 0 : i32
    %14 = arith.cmpi eq, %arg1, %c0_i32_15 : i32
    %15 = arith.extui %14 : i1 to i32
    %c0_i32_16 = arith.constant 0 : i32
    %16 = arith.cmpi ne, %15, %c0_i32_16 : i32
    scf.if %16 {
      %c0_17 = arith.constant 0 : index
      %c0_18 = arith.constant 0 : index
      %17 = vector.load %arg7[%c0_17, %c0_18] : memref<128x128xf32, #tpu.memory_space<vmem>>, vector<128x128xf32>
      %18 = arith.truncf %17 : vector<128x128xf32> to vector<128x128xbf16>
      %c0_19 = arith.constant 0 : index
      %c0_20 = arith.constant 0 : index
      %19 = vector.load %arg5[%c0_19, %c0_20] : memref<128x128xbf16, #tpu.memory_space<vmem>>, vector<128x128xbf16>
      tpu.vector_store %arg5[%c0_19, %c0_20], %18 {strides = array<i32>} : memref<128x128xbf16, #tpu.memory_space<vmem>>, vector<128x128xbf16>,
      %c0_21 = arith.constant 0 : index
      %c0_22 = arith.constant 0 : index
      %20 = vector.load %arg8[%c0_21, %c0_22] : memref<1x128xf32, #tpu.memory_space<vmem>>, vector<1x128xf32>
      %c0_23 = arith.constant 0 : index
      %c0_24 = arith.constant 0 : index
      %21 = vector.load %arg6[%c0_23, %c0_24] : memref<1x128xf32, #tpu.memory_space<vmem>>, vector<1x128xf32>
      tpu.vector_store %arg6[%c0_23, %c0_24], %20 {strides = array<i32>} : memref<1x128xf32, #tpu.memory_space<vmem>>, vector<1x128xf32>,
    } else {
    }
    return
  }
  func.func @transform_0(%arg0: i32, %arg1: i32) -> (i32, i32) {
    %c0_i32 = arith.constant 0 : i32
    return %arg0, %arg1 : i32, i32
  }
  func.func @transform_1(%arg0: i32, %arg1: i32) -> (i32, i32) {
    %c0_i32 = arith.constant 0 : i32
    %c0_i32_0 = arith.constant 0 : i32
    return %arg1, %c0_i32 : i32, i32
  }
  func.func @transform_2(%arg0: i32, %arg1: i32) -> (i32, i32) {
    %c0_i32 = arith.constant 0 : i32
    %c0_i32_0 = arith.constant 0 : i32
    return %c0_i32, %arg1 : i32, i32
  }
  func.func @transform_3(%arg0: i32, %arg1: i32) -> (i32, i32) {
    %c0_i32 = arith.constant 0 : i32
    %c0_i32_0 = arith.constant 0 : i32
    return %arg0, %c0_i32 : i32, i32
  }
  func.func @transform_4(%arg0: i32, %arg1: i32) -> (i32, i32) {
    %c0_i32 = arith.constant 0 : i32
    %c0_i32_0 = arith.constant 0 : i32
    return %c0_i32, %arg0 : i32, i32
  }
}

module attributes {stable_mosaic.version = 11 : i64} {
  func.func @_out_kernel(%arg0: i32, %arg1: i32, %arg2: memref<16x128xbf16, #tpu.memory_space<vmem>>, %arg3: memref<128x128xbf16, #tpu.memory_space<vmem>>, %arg4: memref<1x128xf32, #tpu.memory_space<vmem>>, %arg5: memref<16x128xf32, #tpu.memory_space<vmem>>) attributes {dimension_semantics = [#tpu.dimension_semantics<parallel>, #tpu.dimension_semantics<parallel>], iteration_bounds = array<i64: 1, 1>, scalar_prefetch = 0 : i64, scratch_operands = 0 : i64, tpu.core_type = #tpu.core_type<tc>, window_params = [{transform_indices = @transform_0, window_bounds = array<i64: 16, 128>}, {transform_indices = @transform_1, window_bounds = array<i64: 128, 128>}, {transform_indices = @transform_2, window_bounds = array<i64: 1, 128>}, {transform_indices = @transform_3, window_bounds = array<i64: 16, 128>}]} {
    %c0 = arith.constant 0 : index
    %c0_0 = arith.constant 0 : index
    %0 = vector.load %arg2[%c0, %c0_0] : memref<16x128xbf16, #tpu.memory_space<vmem>>, vector<16x128xbf16>
    %c0_1 = arith.constant 0 : index
    %c0_2 = arith.constant 0 : index
    %1 = vector.load %arg3[%c0_1, %c0_2] : memref<128x128xbf16, #tpu.memory_space<vmem>>, vector<128x128xbf16>
    %cst = arith.constant dense<0.000000e+00> : vector<16x128xf32>
    %2 = tpu.matmul %0, %1, %cst {dimension_numbers = #tpu.dot_dimension_numbers<[1], [1], [0], [0], [0, 0, 1, 0], [], []>} : vector<16x128xbf16>, vector<128x128xbf16>, vector<16x128xf32> -> vector<16x128xf32>
    %c0_3 = arith.constant 0 : index
    %c0_4 = arith.constant 0 : index
    %3 = vector.load %arg4[%c0_3, %c0_4] : memref<1x128xf32, #tpu.memory_space<vmem>>, vector<1x128xf32>
    %4 = vector.broadcast %3 : vector<1x128xf32> to vector<16x128xf32>
    %5 = arith.addf %2, %4 : vector<16x128xf32>
    %c0_5 = arith.constant 0 : index
    %c0_6 = arith.constant 0 : index
    %6 = vector.load %arg5[%c0_5, %c0_6] : memref<16x128xf32, #tpu.memory_space<vmem>>, vector<16x128xf32>
    tpu.vector_store %arg5[%c0_5, %c0_6], %5 {strides = array<i32>} : memref<16x128xf32, #tpu.memory_space<vmem>>, vector<16x128xf32>,
    return
  }
  func.func @transform_0(%arg0: i32, %arg1: i32) -> (i32, i32) {
    %c0_i32 = arith.constant 0 : i32
    %c0_i32_0 = arith.constant 0 : i32
    return %arg0, %c0_i32 : i32, i32
  }
  func.func @transform_1(%arg0: i32, %arg1: i32) -> (i32, i32) {
    %c0_i32 = arith.constant 0 : i32
    %c0_i32_0 = arith.constant 0 : i32
    return %arg1, %c0_i32 : i32, i32
  }
  func.func @transform_2(%arg0: i32, %arg1: i32) -> (i32, i32) {
    %c0_i32 = arith.constant 0 : i32
    %c0_i32_0 = arith.constant 0 : i32
    return %c0_i32, %arg1 : i32, i32
  }
  func.func @transform_3(%arg0: i32, %arg1: i32) -> (i32, i32) {
    %c0_i32 = arith.constant 0 : i32
    return %arg0, %arg1 : i32, i32
  }
}

</mosaic_0001>

<llo_original>
// kernel: my_bilinear.3
$region0: #{my_bilinear.3}
  #allocation0 [shape = 'u32[]', space=smem, size = 0x4, offset = 0x4, fixed_abs, tag = 'smem constant byte address 0x4 - core index']
  #allocation1 [shape = 'u32[144,128]{1,0:T(1,128)}', space=vmem, size = 0x12000, scoped, tag = 'internal scratch']
  %s0 = inlined_call_operand.vmem [shape: bf16[16,128], index: 0, kind: input, shape index: {}]
  %s1 = inlined_call_operand.vmem [shape: bf16[128,128], index: 1, kind: input, shape index: {}]
  %s2 = inlined_call_operand.vmem [shape: f32[1,128], index: 2, kind: input, shape index: {}]
  %s3 = inlined_call_operand.vmem [shape: f32[16,128], index: 3, kind: output, shape index: {}]
  %s4 = sld [smem:[#allocation0]]
  $region22: #{my_bilinear.3} parent=0
    _
  %s6 = ssub.s32 1, %s4
  %s7 = scalar_select 0, %s6, %s4
  // Predicated region
  $region2: #{my_bilinear.3} parent=0 // pred_check
    _
  $region3: #{my_bilinear.3} parent=0 // pred_check_branch
    %9 = sbr.rel (0) target = $region5
  $region4: #{my_bilinear.3} parent=0 // pred_region
    _
  $region5: #{my_bilinear.3} parent=0 // pred_fallthru
    _
  // Predicated region
  $region6: #{my_bilinear.3} parent=0 // pred_check
    _
  $region7: #{my_bilinear.3} parent=0 // pred_check_branch
    %11 = sbr.rel (0) target = $region9
  $region8: #{my_bilinear.3} parent=0 // pred_region
    _
  $region9: #{my_bilinear.3} parent=0 // pred_fallthru
    _
  // Predicated region
  $region10: #{my_bilinear.3} parent=0 // pred_check
    _
  $region11: #{my_bilinear.3} parent=0 // pred_check_branch
    %13 = sbr.rel (0) target = $region13
  $region12: #{my_bilinear.3} parent=0 // pred_region
    _
  $region13: #{my_bilinear.3} parent=0 // pred_fallthru
    _
  %v15 = vld [vmem:[%s0] sm:$0xf]
  %v16 = vld [vmem:[%s0 + $0x4] sm:$0xf]
  %v17 = vld [vmem:[%s1] sm:$0xf]
  %v18 = vld [vmem:[%s1 + $0x4] sm:$0xf]
  %v19 = vld [vmem:[%s1 + $0x8] sm:$0xf]
  %v20 = vld [vmem:[%s1 + $0xc] sm:$0xf]
  %v21 = vld [vmem:[%s1 + $0x10] sm:$0xf]
  %v22 = vld [vmem:[%s1 + $0x14] sm:$0xf]
  %v23 = vld [vmem:[%s1 + $0x18] sm:$0xf]
  %v24 = vld [vmem:[%s1 + $0x1c] sm:$0xf]
  %v25 = vld [vmem:[%s1 + $0x20] sm:$0xf]
  %v26 = vld [vmem:[%s1 + $0x24] sm:$0xf]
  %v27 = vld [vmem:[%s1 + $0x28] sm:$0xf]
  %v28 = vld [vmem:[%s1 + $0x2c] sm:$0xf]
  %v29 = vld [vmem:[%s1 + $0x30] sm:$0xf]
  %v30 = vld [vmem:[%s1 + $0x34] sm:$0xf]
  %v31 = vld [vmem:[%s1 + $0x38] sm:$0xf]
  %v32 = vld [vmem:[%s1 + $0x3c] sm:$0xf]
  %v33 = vld [vmem:[%s2] sm:$0x1]
  %v35 = vlaneseq
  %v36 = vshrl.u32 %v35, 7
  %v37 = vsub.s32 0, %v36
  %v38 = vrot.slane %v33, %v37
  %v42 = vunpack.c.l.b16 %v15
  %v43 = vunpack.c.l.b16 %v16
  %v44 = vpack.c.b16 %v43, %v42
  %v62 = vunpack.c.l.b16 %v17
  %v63 = vunpack.c.l.b16 %v18
  %v64 = vunpack.c.l.b16 %v19
  %v65 = vunpack.c.l.b16 %v20
  %v66 = vunpack.c.l.b16 %v21
  %v67 = vunpack.c.l.b16 %v22
  %v68 = vunpack.c.l.b16 %v23
  %v69 = vunpack.c.l.b16 %v24
  %v70 = vunpack.c.l.b16 %v25
  %v71 = vunpack.c.l.b16 %v26
  %v72 = vunpack.c.l.b16 %v27
  %v73 = vunpack.c.l.b16 %v28
  %v74 = vunpack.c.l.b16 %v29
  %v75 = vunpack.c.l.b16 %v30
  %v76 = vunpack.c.l.b16 %v31
  %v77 = vunpack.c.l.b16 %v32
  %v78 = vpack.c.b16 %v63, %v62
  %v79 = vpack.c.b16 %v65, %v64
  %v80 = vpack.c.b16 %v67, %v66
  %v81 = vpack.c.b16 %v69, %v68
  %v82 = vpack.c.b16 %v71, %v70
  %v83 = vpack.c.b16 %v73, %v72
  %v84 = vpack.c.b16 %v75, %v74
  %v85 = vpack.c.b16 %v77, %v76
  %94 = vmatprep.subr.bf16.mxu0 0
  %95 = vmatpush1.bf16.xpose.msra.mxu0 %v78
  %96 = vmatprep.subr.bf16.mxu0 0
  %97 = vmatpush1.bf16.xpose.msra.mxu0 %v79
  %98 = vmatprep.subr.bf16.mxu0 0
  %99 = vmatpush1.bf16.xpose.msra.mxu0 %v80
  %100 = vmatprep.subr.bf16.mxu0 0
  %101 = vmatpush1.bf16.xpose.msra.mxu0 %v81
  %102 = vmatprep.subr.bf16.mxu0 0
  %103 = vmatpush1.bf16.xpose.msra.mxu0 %v82
  %104 = vmatprep.subr.bf16.mxu0 0
  %105 = vmatpush1.bf16.xpose.msra.mxu0 %v83
  %106 = vmatprep.subr.bf16.mxu0 0
  %107 = vmatpush1.bf16.xpose.msra.mxu0 %v84
  %108 = vmatprep.subr.bf16.mxu0 0
  %109 = vmatpush1.bf16.xpose.msra.mxu0 %v85
  %110 = vmatprep.subr.bf16.mxu0 0
  %111 = vmatpush1.bf16.xpose.msra.mxu0 0
  %112 = vmatprep.subr.bf16.mxu0 0
  %113 = vmatpush1.bf16.xpose.msra.mxu0 0
  %114 = vmatprep.subr.bf16.mxu0 0
  %115 = vmatpush1.bf16.xpose.msra.mxu0 0
  %116 = vmatprep.subr.bf16.mxu0 0
  %117 = vmatpush1.bf16.xpose.msra.mxu0 0
  %118 = vmatprep.subr.bf16.mxu0 0
  %119 = vmatpush1.bf16.xpose.msra.mxu0 0
  %120 = vmatprep.subr.bf16.mxu0 0
  %121 = vmatpush1.bf16.xpose.msra.mxu0 0
  %122 = vmatprep.subr.bf16.mxu0 0
  %123 = vmatpush1.bf16.xpose.msra.mxu0 0
  %124 = vmatprep.subr.bf16.mxu0 0
  %125 = vmatpush1.bf16.xpose.msra.mxu0 0
  %126 = vmatprep.mubr.bf16.mxu0 0
  %127 = vmatmul.mubr.bf16.gmra.mrb[0].mxu0 %v44
  %v128 = vpop.f32.mrb[0].mxu0
  %v129 = vadd.f32 %v38, %v128
  %v130 = vpop.f32.mrb[0].mxu0
  %v131 = vpop.f32.mrb[0].mxu0
  %v132 = vadd.f32 %v38, %v131
  %v133 = vpop.f32.mrb[0].mxu0
  %134 = vdwg.mxu0
  %135 = vst [vmem:[%s3] sm:$0xff] %v129
  %136 = vst [vmem:[%s3 + $0x8] sm:$0xff] %v132
  // Predicated region
  $region14: #{my_bilinear.3} parent=0 // pred_check
    _
  $region15: #{my_bilinear.3} parent=0 // pred_check_branch
    %138 = sbr.rel (0) target = $region17
  $region16: #{my_bilinear.3} parent=0 // pred_region
    _
  $region17: #{my_bilinear.3} parent=0 // pred_fallthru
    _
  // Predicated region
  $region18: #{my_bilinear.3} parent=0 // pred_check
    _
  $region19: #{my_bilinear.3} parent=0 // pred_check_branch
    %140 = sbr.rel (0) target = $region21
  $region20: #{my_bilinear.3} parent=0 // pred_region
    _
  $region21: #{my_bilinear.3} parent=0 // pred_fallthru
    _

// kernel: my_bilinear.2
$region0: #{my_bilinear.2}
  #allocation0 [shape = 'u32[]', space=smem, size = 0x4, offset = 0x4, fixed_abs, tag = 'smem constant byte address 0x4 - core index']
  #allocation1 [shape = 'u32[144,128]{1,0:T(1,128)}', space=vmem, size = 0x12000, scoped, tag = 'internal scratch']
  #allocation2 [shape = 'f32[128,128]{1,0:T(8,128)}', space=vmem, size = 0x10000, scoped, tag = 'scratch operand']
  #allocation3 [shape = 'f32[1,128]{1,0:T(1,128)}', space=vmem, size = 0x200, scoped, tag = 'scratch operand']
  %s0 = inlined_call_operand.vmem [shape: bf16[128,128], index: 0, kind: input, shape index: {}]
  %s1 = inlined_call_operand.vmem [shape: bf16[128,128], index: 1, kind: input, shape index: {}]
  %s2 = inlined_call_operand.vmem [shape: bf16[1,128], index: 2, kind: input, shape index: {}]
  %s3 = inlined_call_operand.vmem [shape: bf16[128,128], index: 3, kind: output, shape index: {0}]
  %s4 = inlined_call_operand.vmem [shape: f32[1,128], index: 4, kind: output, shape index: {1}]
  %5 = xla_tuple %s3, %s4
  %s6 = sld [smem:[#allocation0]]
  $region38: #{my_bilinear.2} parent=0
    _
  %s8 = ssub.s32 1, %s6
  %s9 = scalar_select 0, %s8, %s6
  // Predicated region
  $region2: #{my_bilinear.2} parent=0 // pred_check
    _
  $region3: #{my_bilinear.2} parent=0 // pred_check_branch
    %11 = sbr.rel (0) target = $region5
  $region4: #{my_bilinear.2} parent=0 // pred_region
    _
  $region5: #{my_bilinear.2} parent=0 // pred_fallthru
    _
  // Predicated region
  $region6: #{my_bilinear.2} parent=0 // pred_check
    _
  $region7: #{my_bilinear.2} parent=0 // pred_check_branch
    %13 = sbr.rel (0) target = $region9
  $region8: #{my_bilinear.2} parent=0 // pred_region
    _
  $region9: #{my_bilinear.2} parent=0 // pred_fallthru
    _
  // Predicated region
  $region10: #{my_bilinear.2} parent=0 // pred_check
    _
  $region11: #{my_bilinear.2} parent=0 // pred_check_branch
    %15 = sbr.rel (0) target = $region13
  $region12: #{my_bilinear.2} parent=0 // pred_region
    _
  $region13: #{my_bilinear.2} parent=0 // pred_fallthru
    _
  %p17 = scmp.eq.s32.totalorder 0, 0
  // Predicated region
  $region14: #{my_bilinear.2} parent=0 // pred_check
    %p18 = pneg %p17
  $region15: #{my_bilinear.2} parent=0 // pred_check_branch
    %20 = sbr.rel (%p18) target = $region17
  $region16: #{my_bilinear.2} parent=0 // pred_region
    %21 = vst [vmem:[#allocation2] sm:$0xff] 0.0
    %22 = vst [vmem:[#allocation2 + $0x8] sm:$0xff] 0.0
    %23 = vst [vmem:[#allocation2 + $0x10] sm:$0xff] 0.0
    %24 = vst [vmem:[#allocation2 + $0x18] sm:$0xff] 0.0
    %25 = vst [vmem:[#allocation2 + $0x20] sm:$0xff] 0.0
    %26 = vst [vmem:[#allocation2 + $0x28] sm:$0xff] 0.0
    %27 = vst [vmem:[#allocation2 + $0x30] sm:$0xff] 0.0
    %28 = vst [vmem:[#allocation2 + $0x38] sm:$0xff] 0.0
    %29 = vst [vmem:[#allocation2 + $0x40] sm:$0xff] 0.0
    %30 = vst [vmem:[#allocation2 + $0x48] sm:$0xff] 0.0
    %31 = vst [vmem:[#allocation2 + $0x50] sm:$0xff] 0.0
    %32 = vst [vmem:[#allocation2 + $0x58] sm:$0xff] 0.0
    %33 = vst [vmem:[#allocation2 + $0x60] sm:$0xff] 0.0
    %34 = vst [vmem:[#allocation2 + $0x68] sm:$0xff] 0.0
    %35 = vst [vmem:[#allocation2 + $0x70] sm:$0xff] 0.0
    %36 = vst [vmem:[#allocation2 + $0x78] sm:$0xff] 0.0
    %37 = vst [vmem:[#allocation3] sm:$0x1] 0.0
  $region17: #{my_bilinear.2} parent=0 // pred_fallthru
    _
  %v38 = vld [vmem:[%s0] sm:$0xf]
  %v39 = vld [vmem:[%s0 + $0x4] sm:$0xf]
  %v40 = vld [vmem:[%s0 + $0x8] sm:$0xf]
  %v41 = vld [vmem:[%s0 + $0xc] sm:$0xf]
  %v42 = vld [vmem:[%s0 + $0x10] sm:$0xf]
  %v43 = vld [vmem:[%s0 + $0x14] sm:$0xf]
  %v44 = vld [vmem:[%s0 + $0x18] sm:$0xf]
  %v45 = vld [vmem:[%s0 + $0x1c] sm:$0xf]
  %v46 = vld [vmem:[%s0 + $0x20] sm:$0xf]
  %v47 = vld [vmem:[%s0 + $0x24] sm:$0xf]
  %v48 = vld [vmem:[%s0 + $0x28] sm:$0xf]
  %v49 = vld [vmem:[%s0 + $0x2c] sm:$0xf]
  %v50 = vld [vmem:[%s0 + $0x30] sm:$0xf]
  %v51 = vld [vmem:[%s0 + $0x34] sm:$0xf]
  %v52 = vld [vmem:[%s0 + $0x38] sm:$0xf]
  %v53 = vld [vmem:[%s0 + $0x3c] sm:$0xf]
  %v54 = vld [vmem:[#allocation2] sm:$0xff]
  %v55 = vld [vmem:[#allocation2 + $0x8] sm:$0xff]
  %v56 = vld [vmem:[#allocation2 + $0x10] sm:$0xff]
  %v57 = vld [vmem:[#allocation2 + $0x18] sm:$0xff]
  %v58 = vld [vmem:[#allocation2 + $0x20] sm:$0xff]
  %v59 = vld [vmem:[#allocation2 + $0x28] sm:$0xff]
  %v60 = vld [vmem:[#allocation2 + $0x30] sm:$0xff]
  %v61 = vld [vmem:[#allocation2 + $0x38] sm:$0xff]
  %v62 = vld [vmem:[#allocation2 + $0x40] sm:$0xff]
  %v63 = vld [vmem:[#allocation2 + $0x48] sm:$0xff]
  %v64 = vld [vmem:[#allocation2 + $0x50] sm:$0xff]
  %v65 = vld [vmem:[#allocation2 + $0x58] sm:$0xff]
  %v66 = vld [vmem:[#allocation2 + $0x60] sm:$0xff]
  %v67 = vld [vmem:[#allocation2 + $0x68] sm:$0xff]
  %v68 = vld [vmem:[#allocation2 + $0x70] sm:$0xff]
  %v69 = vld [vmem:[#allocation2 + $0x78] sm:$0xff]
  %v70 = vld [vmem:[%s1] sm:$0xf]
  %v71 = vld [vmem:[%s1 + $0x4] sm:$0xf]
  %v72 = vld [vmem:[%s1 + $0x8] sm:$0xf]
  %v73 = vld [vmem:[%s1 + $0xc] sm:$0xf]
  %v74 = vld [vmem:[%s1 + $0x10] sm:$0xf]
  %v75 = vld [vmem:[%s1 + $0x14] sm:$0xf]
  %v76 = vld [vmem:[%s1 + $0x18] sm:$0xf]
  %v77 = vld [vmem:[%s1 + $0x1c] sm:$0xf]
  %v78 = vld [vmem:[%s1 + $0x20] sm:$0xf]
  %v79 = vld [vmem:[%s1 + $0x24] sm:$0xf]
  %v80 = vld [vmem:[%s1 + $0x28] sm:$0xf]
  %v81 = vld [vmem:[%s1 + $0x2c] sm:$0xf]
  %v82 = vld [vmem:[%s1 + $0x30] sm:$0xf]
  %v83 = vld [vmem:[%s1 + $0x34] sm:$0xf]
  %v84 = vld [vmem:[%s1 + $0x38] sm:$0xf]
  %v85 = vld [vmem:[%s1 + $0x3c] sm:$0xf]
  %v102 = vunpack.c.l.b16 %v38
  %v103 = vunpack.c.l.b16 %v39
  %v104 = vunpack.c.l.b16 %v40
  %v105 = vunpack.c.l.b16 %v41
  %v106 = vunpack.c.l.b16 %v42
  %v107 = vunpack.c.l.b16 %v43
  %v108 = vunpack.c.l.b16 %v44
  %v109 = vunpack.c.l.b16 %v45
  %v110 = vunpack.c.l.b16 %v46
  %v111 = vunpack.c.l.b16 %v47
  %v112 = vunpack.c.l.b16 %v48
  %v113 = vunpack.c.l.b16 %v49
  %v114 = vunpack.c.l.b16 %v50
  %v115 = vunpack.c.l.b16 %v51
  %v116 = vunpack.c.l.b16 %v52
  %v117 = vunpack.c.l.b16 %v53
  %v118 = vpack.c.b16 %v103, %v102
  %v119 = vpack.c.b16 %v105, %v104
  %v120 = vpack.c.b16 %v107, %v106
  %v121 = vpack.c.b16 %v109, %v108
  %v122 = vpack.c.b16 %v111, %v110
  %v123 = vpack.c.b16 %v113, %v112
  %v124 = vpack.c.b16 %v115, %v114
  %v125 = vpack.c.b16 %v117, %v116
  %v150 = vunpack.c.l.b16 %v70
  %v151 = vunpack.c.l.b16 %v71
  %v152 = vunpack.c.l.b16 %v72
  %v153 = vunpack.c.l.b16 %v73
  %v154 = vunpack.c.l.b16 %v74
  %v155 = vunpack.c.l.b16 %v75
  %v156 = vunpack.c.l.b16 %v76
  %v157 = vunpack.c.l.b16 %v77
  %v158 = vunpack.c.l.b16 %v78
  %v159 = vunpack.c.l.b16 %v79
  %v160 = vunpack.c.l.b16 %v80
  %v161 = vunpack.c.l.b16 %v81
  %v162 = vunpack.c.l.b16 %v82
  %v163 = vunpack.c.l.b16 %v83
  %v164 = vunpack.c.l.b16 %v84
  %v165 = vunpack.c.l.b16 %v85
  %v166 = vpack.c.b16 %v151, %v150
  %v167 = vpack.c.b16 %v153, %v152
  %v168 = vpack.c.b16 %v155, %v154
  %v169 = vpack.c.b16 %v157, %v156
  %v170 = vpack.c.b16 %v159, %v158
  %v171 = vpack.c.b16 %v161, %v160
  %v172 = vpack.c.b16 %v163, %v162
  %v173 = vpack.c.b16 %v165, %v164
  %182 = vmatprep.subr.bf16.mxu0 0
  %183 = vmatpush1.bf16.msra.mxu0 %v166
  %184 = vmatprep.subr.bf16.mxu0 0
  %185 = vmatpush1.bf16.msra.mxu0 %v167
  %186 = vmatprep.subr.bf16.mxu0 0
  %187 = vmatpush1.bf16.msra.mxu0 %v168
  %188 = vmatprep.subr.bf16.mxu0 0
  %189 = vmatpush1.bf16.msra.mxu0 %v169
  %190 = vmatprep.subr.bf16.mxu0 0
  %191 = vmatpush1.bf16.msra.mxu0 %v170
  %192 = vmatprep.subr.bf16.mxu0 0
  %193 = vmatpush1.bf16.msra.mxu0 %v171
  %194 = vmatprep.subr.bf16.mxu0 0
  %195 = vmatpush1.bf16.msra.mxu0 %v172
  %196 = vmatprep.subr.bf16.mxu0 0
  %197 = vmatpush1.bf16.msra.mxu0 %v173
  %198 = vmatprep.subr.bf16.mxu0 0
  %199 = vmatpush1.bf16.msra.mxu0 0
  %200 = vmatprep.subr.bf16.mxu0 0
  %201 = vmatpush1.bf16.msra.mxu0 0
  %202 = vmatprep.subr.bf16.mxu0 0
  %203 = vmatpush1.bf16.msra.mxu0 0
  %204 = vmatprep.subr.bf16.mxu0 0
  %205 = vmatpush1.bf16.msra.mxu0 0
  %206 = vmatprep.subr.bf16.mxu0 0
  %207 = vmatpush1.bf16.msra.mxu0 0
  %208 = vmatprep.subr.bf16.mxu0 0
  %209 = vmatpush1.bf16.msra.mxu0 0
  %210 = vmatprep.subr.bf16.mxu0 0
  %211 = vmatpush1.bf16.msra.mxu0 0
  %212 = vmatprep.subr.bf16.mxu0 0
  %213 = vmatpush1.bf16.msra.mxu0 0
  %214 = vmatprep.mubr.bf16.mxu0 0
  %215 = vmatmul.mubr.bf16.gmra.mrb[0].mxu0 %v118
  %v216 = vpop.f32.mrb[0].mxu0
  %v217 = vadd.f32 0.0, %v216
  %v218 = vpop.f32.mrb[0].mxu0
  %v219 = vpop.f32.mrb[0].mxu0
  %v220 = vadd.f32 0.0, %v219
  %v221 = vpop.f32.mrb[0].mxu0
  %222 = vmatprep.mubr.bf16.mxu0 0
  %223 = vmatmul.mubr.bf16.gmra.mrb[0].mxu0 %v119
  %v224 = vpop.f32.mrb[0].mxu0
  %v225 = vadd.f32 0.0, %v224
  %v226 = vpop.f32.mrb[0].mxu0
  %v227 = vpop.f32.mrb[0].mxu0
  %v228 = vadd.f32 0.0, %v227
  %v229 = vpop.f32.mrb[0].mxu0
  %230 = vmatprep.mubr.bf16.mxu0 0
  %231 = vmatmul.mubr.bf16.gmra.mrb[0].mxu0 %v120
  %v232 = vpop.f32.mrb[0].mxu0
  %v233 = vadd.f32 0.0, %v232
  %v234 = vpop.f32.mrb[0].mxu0
  %v235 = vpop.f32.mrb[0].mxu0
  %v236 = vadd.f32 0.0, %v235
  %v237 = vpop.f32.mrb[0].mxu0
  %238 = vmatprep.mubr.bf16.mxu0 0
  %239 = vmatmul.mubr.bf16.gmra.mrb[0].mxu0 %v121
  %v240 = vpop.f32.mrb[0].mxu0
  %v241 = vadd.f32 0.0, %v240
  %v242 = vpop.f32.mrb[0].mxu0
  %v243 = vpop.f32.mrb[0].mxu0
  %v244 = vadd.f32 0.0, %v243
  %v245 = vpop.f32.mrb[0].mxu0
  %246 = vmatprep.mubr.bf16.mxu0 0
  %247 = vmatmul.mubr.bf16.gmra.mrb[0].mxu0 %v122
  %v248 = vpop.f32.mrb[0].mxu0
  %v249 = vadd.f32 0.0, %v248
  %v250 = vpop.f32.mrb[0].mxu0
  %v251 = vpop.f32.mrb[0].mxu0
  %v252 = vadd.f32 0.0, %v251
  %v253 = vpop.f32.mrb[0].mxu0
  %254 = vmatprep.mubr.bf16.mxu0 0
  %255 = vmatmul.mubr.bf16.gmra.mrb[0].mxu0 %v123
  %v256 = vpop.f32.mrb[0].mxu0
  %v257 = vadd.f32 0.0, %v256
  %v258 = vpop.f32.mrb[0].mxu0
  %v259 = vpop.f32.mrb[0].mxu0
  %v260 = vadd.f32 0.0, %v259
  %v261 = vpop.f32.mrb[0].mxu0
  %262 = vmatprep.mubr.bf16.mxu0 0
  %263 = vmatmul.mubr.bf16.gmra.mrb[0].mxu0 %v124
  %v264 = vpop.f32.mrb[0].mxu0
  %v265 = vadd.f32 0.0, %v264
  %v266 = vpop.f32.mrb[0].mxu0
  %v267 = vpop.f32.mrb[0].mxu0
  %v268 = vadd.f32 0.0, %v267
  %v269 = vpop.f32.mrb[0].mxu0
  %270 = vmatprep.mubr.bf16.mxu0 0
  %271 = vmatmul.mubr.bf16.gmra.mrb[0].mxu0 %v125
  %v272 = vpop.f32.mrb[0].mxu0
  %v273 = vadd.f32 0.0, %v272
  %v274 = vpop.f32.mrb[0].mxu0
  %v275 = vpop.f32.mrb[0].mxu0
  %v276 = vadd.f32 0.0, %v275
  %v277 = vpop.f32.mrb[0].mxu0
  %278 = vdwg.mxu0
  %v279 = vadd.f32 %v54, %v217
  %v280 = vadd.f32 %v55, %v220
  %v281 = vadd.f32 %v56, %v225
  %v282 = vadd.f32 %v57, %v228
  %v283 = vadd.f32 %v58, %v233
  %v284 = vadd.f32 %v59, %v236
  %v285 = vadd.f32 %v60, %v241
  %v286 = vadd.f32 %v61, %v244
  %v287 = vadd.f32 %v62, %v249
  %v288 = vadd.f32 %v63, %v252
  %v289 = vadd.f32 %v64, %v257
  %v290 = vadd.f32 %v65, %v260
  %v291 = vadd.f32 %v66, %v265
  %v292 = vadd.f32 %v67, %v268
  %v293 = vadd.f32 %v68, %v273
  %v294 = vadd.f32 %v69, %v276
  %295 = vst [vmem:[#allocation2] sm:$0xff] %v279
  %296 = vst [vmem:[#allocation2 + $0x8] sm:$0xff] %v280
  %297 = vst [vmem:[#allocation2 + $0x10] sm:$0xff] %v281
  %298 = vst [vmem:[#allocation2 + $0x18] sm:$0xff] %v282
  %299 = vst [vmem:[#allocation2 + $0x20] sm:$0xff] %v283
  %300 = vst [vmem:[#allocation2 + $0x28] sm:$0xff] %v284
  %301 = vst [vmem:[#allocation2 + $0x30] sm:$0xff] %v285
  %302 = vst [vmem:[#allocation2 + $0x38] sm:$0xff] %v286
  %303 = vst [vmem:[#allocation2 + $0x40] sm:$0xff] %v287
  %304 = vst [vmem:[#allocation2 + $0x48] sm:$0xff] %v288
  %305 = vst [vmem:[#allocation2 + $0x50] sm:$0xff] %v289
  %306 = vst [vmem:[#allocation2 + $0x58] sm:$0xff] %v290
  %307 = vst [vmem:[#allocation2 + $0x60] sm:$0xff] %v291
  %308 = vst [vmem:[#allocation2 + $0x68] sm:$0xff] %v292
  %309 = vst [vmem:[#allocation2 + $0x70] sm:$0xff] %v293
  %310 = vst [vmem:[#allocation2 + $0x78] sm:$0xff] %v294
  %v311 = vld [vmem:[#allocation3] sm:$0x1]
  %v312 = vld [vmem:[%s2] sm:$0x1]
  %313 = vmatprep.subr.bf16.mxu0 0
  %314 = vmatpush1.bf16.xpose.msra.mxu0 %v118
  %315 = vmatprep.subr.bf16.mxu0 0
  %316 = vmatpush1.bf16.xpose.msra.mxu0 %v119
  %317 = vmatprep.subr.bf16.mxu0 0
  %318 = vmatpush1.bf16.xpose.msra.mxu0 %v120
  %319 = vmatprep.subr.bf16.mxu0 0
  %320 = vmatpush1.bf16.xpose.msra.mxu0 %v121
  %321 = vmatprep.subr.bf16.mxu0 0
  %322 = vmatpush1.bf16.xpose.msra.mxu0 %v122
  %323 = vmatprep.subr.bf16.mxu0 0
  %324 = vmatpush1.bf16.xpose.msra.mxu0 %v123
  %325 = vmatprep.subr.bf16.mxu0 0
  %326 = vmatpush1.bf16.xpose.msra.mxu0 %v124
  %327 = vmatprep.subr.bf16.mxu0 0
  %328 = vmatpush1.bf16.xpose.msra.mxu0 %v125
  %329 = vmatprep.subr.bf16.mxu0 0
  %330 = vmatpush1.bf16.xpose.msra.mxu0 0
  %331 = vmatprep.subr.bf16.mxu0 0
  %332 = vmatpush1.bf16.xpose.msra.mxu0 0
  %333 = vmatprep.subr.bf16.mxu0 0
  %334 = vmatpush1.bf16.xpose.msra.mxu0 0
  %335 = vmatprep.subr.bf16.mxu0 0
  %336 = vmatpush1.bf16.xpose.msra.mxu0 0
  %337 = vmatprep.subr.bf16.mxu0 0
  %338 = vmatpush1.bf16.xpose.msra.mxu0 0
  %339 = vmatprep.subr.bf16.mxu0 0
  %340 = vmatpush1.bf16.xpose.msra.mxu0 0
  %341 = vmatprep.subr.bf16.mxu0 0
  %342 = vmatpush1.bf16.xpose.msra.mxu0 0
  %343 = vmatprep.subr.bf16.mxu0 0
  %344 = vmatpush1.bf16.xpose.msra.mxu0 0
  %345 = vmatprep.mubr.bf16.mxu0 0
  %346 = vmatmul.mubr.bf16.gmra.mrb[0].mxu0 %v312
  %v347 = vpop.f32.mrb[0].mxu0
  %v348 = vadd.f32 0.0, %v347
  %v349 = vpop.f32.mrb[0].mxu0
  %v350 = vpop.f32.mrb[0].mxu0
  %v351 = vpop.f32.mrb[0].mxu0
  %352 = vdwg.mxu0
  %v353 = vadd.f32 %v311, %v348
  %354 = vst [vmem:[#allocation3] sm:$0x1] %v353
  // Predicated region
  $region18: #{my_bilinear.2} parent=0 // pred_check
    %p355 = pneg %p17
  $region19: #{my_bilinear.2} parent=0 // pred_check_branch
    %357 = sbr.rel (%p355) target = $region21
  $region20: #{my_bilinear.2} parent=0 // pred_region
    %v358 = vld [vmem:[#allocation2] sm:$0xff]
    %v359 = vld [vmem:[#allocation2 + $0x8] sm:$0xff]
    %v360 = vld [vmem:[#allocation2 + $0x10] sm:$0xff]
    %v361 = vld [vmem:[#allocation2 + $0x18] sm:$0xff]
    %v362 = vld [vmem:[#allocation2 + $0x20] sm:$0xff]
    %v363 = vld [vmem:[#allocation2 + $0x28] sm:$0xff]
    %v364 = vld [vmem:[#allocation2 + $0x30] sm:$0xff]
    %v365 = vld [vmem:[#allocation2 + $0x38] sm:$0xff]
    %v366 = vld [vmem:[#allocation2 + $0x40] sm:$0xff]
    %v367 = vld [vmem:[#allocation2 + $0x48] sm:$0xff]
    %v368 = vld [vmem:[#allocation2 + $0x50] sm:$0xff]
    %v369 = vld [vmem:[#allocation2 + $0x58] sm:$0xff]
    %v370 = vld [vmem:[#allocation2 + $0x60] sm:$0xff]
    %v371 = vld [vmem:[#allocation2 + $0x68] sm:$0xff]
    %v372 = vld [vmem:[#allocation2 + $0x70] sm:$0xff]
    %v373 = vld [vmem:[#allocation2 + $0x78] sm:$0xff]
    %v374 = vpack.c.bf16 %v359, %v358
    %v375 = vpack.c.bf16 %v361, %v360
    %v376 = vpack.c.bf16 %v363, %v362
    %v377 = vpack.c.bf16 %v365, %v364
    %v378 = vpack.c.bf16 %v367, %v366
    %v379 = vpack.c.bf16 %v369, %v368
    %v380 = vpack.c.bf16 %v371, %v370
    %v381 = vpack.c.bf16 %v373, %v372
    %v390 = vunpack.c.l.b16 %v374
    %v391 = vunpack.c.h.b16 %v374
    %v392 = vunpack.c.l.b16 %v375
    %v393 = vunpack.c.h.b16 %v375
    %v394 = vunpack.c.l.b16 %v376
    %v395 = vunpack.c.h.b16 %v376
    %v396 = vunpack.c.l.b16 %v377
    %v397 = vunpack.c.h.b16 %v377
    %v398 = vunpack.c.l.b16 %v378
    %v399 = vunpack.c.h.b16 %v378
    %v400 = vunpack.c.l.b16 %v379
    %v401 = vunpack.c.h.b16 %v379
    %v402 = vunpack.c.l.b16 %v380
    %v403 = vunpack.c.h.b16 %v380
    %v404 = vunpack.c.l.b16 %v381
    %v405 = vunpack.c.h.b16 %v381
    %v406 = vpack.c.b16 %v390, %v390
    %v407 = vpack.c.b16 %v391, %v391
    %v408 = vpack.c.b16 %v392, %v392
    %v409 = vpack.c.b16 %v393, %v393
    %v410 = vpack.c.b16 %v394, %v394
    %v411 = vpack.c.b16 %v395, %v395
    %v412 = vpack.c.b16 %v396, %v396
    %v413 = vpack.c.b16 %v397, %v397
    %v414 = vpack.c.b16 %v398, %v398
    %v415 = vpack.c.b16 %v399, %v399
    %v416 = vpack.c.b16 %v400, %v400
    %v417 = vpack.c.b16 %v401, %v401
    %v418 = vpack.c.b16 %v402, %v402
    %v419 = vpack.c.b16 %v403, %v403
    %v420 = vpack.c.b16 %v404, %v404
    %v421 = vpack.c.b16 %v405, %v405
    %438 = vst [vmem:[%s3] sm:$0xf] %v406
    %439 = vst [vmem:[%s3 + $0x4] sm:$0xf] %v407
    %440 = vst [vmem:[%s3 + $0x8] sm:$0xf] %v408
    %441 = vst [vmem:[%s3 + $0xc] sm:$0xf] %v409
    %442 = vst [vmem:[%s3 + $0x10] sm:$0xf] %v410
    %443 = vst [vmem:[%s3 + $0x14] sm:$0xf] %v411
    %444 = vst [vmem:[%s3 + $0x18] sm:$0xf] %v412
    %445 = vst [vmem:[%s3 + $0x1c] sm:$0xf] %v413
    %446 = vst [vmem:[%s3 + $0x20] sm:$0xf] %v414
    %447 = vst [vmem:[%s3 + $0x24] sm:$0xf] %v415
    %448 = vst [vmem:[%s3 + $0x28] sm:$0xf] %v416
    %449 = vst [vmem:[%s3 + $0x2c] sm:$0xf] %v417
    %450 = vst [vmem:[%s3 + $0x30] sm:$0xf] %v418
    %451 = vst [vmem:[%s3 + $0x34] sm:$0xf] %v419
    %452 = vst [vmem:[%s3 + $0x38] sm:$0xf] %v420
    %453 = vst [vmem:[%s3 + $0x3c] sm:$0xf] %v421
    %v454 = vld [vmem:[#allocation3] sm:$0x1]
    %455 = vst [vmem:[%s4] sm:$0x1] %v454
  $region21: #{my_bilinear.2} parent=0 // pred_fallthru
    _
  // Predicated region
  $region22: #{my_bilinear.2} parent=0 // pred_check
    _
  $region23: #{my_bilinear.2} parent=0 // pred_check_branch
    %457 = sbr.rel (0) target = $region25
  $region24: #{my_bilinear.2} parent=0 // pred_region
    _
  $region25: #{my_bilinear.2} parent=0 // pred_fallthru
    _
  // Predicated region
  $region26: #{my_bilinear.2} parent=0 // pred_check
    _
  $region27: #{my_bilinear.2} parent=0 // pred_check_branch
    %459 = sbr.rel (0) target = $region29
  $region28: #{my_bilinear.2} parent=0 // pred_region
    _
  $region29: #{my_bilinear.2} parent=0 // pred_fallthru
    _
  // Predicated region
  $region30: #{my_bilinear.2} parent=0 // pred_check
    _
  $region31: #{my_bilinear.2} parent=0 // pred_check_branch
    %461 = sbr.rel (0) target = $region33
  $region32: #{my_bilinear.2} parent=0 // pred_region
    _
  $region33: #{my_bilinear.2} parent=0 // pred_fallthru
    _
  // Predicated region
  $region34: #{my_bilinear.2} parent=0 // pred_check
    _
  $region35: #{my_bilinear.2} parent=0 // pred_check_branch
    %463 = sbr.rel (0) target = $region37
  $region36: #{my_bilinear.2} parent=0 // pred_region
    _
  $region37: #{my_bilinear.2} parent=0 // pred_fallthru
    _

</llo_original>
